<compile_context>
chip_gen: v7x
topology: tpu7x:2x2x1
jax: 0.10.0
libtpu: 0.0.40
codegen_flags: <defaults>
</compile_context>

<pallas_src>
import functools

import jax
import jax.numpy as jnp
from jax import lax
from jax.experimental import pallas as pl
from jax.experimental.pallas import tpu as pltpu


def mass_kernel(x_ref, coords_ref, o_ref, acc_i, acc_j, acc_m, *, coords_resident):
    # x_ref:      [1, C, THW]        one spatial tile of one batch element
    # coords_ref: [num_k, 2, THW]    (resident)  or  [1, 2, THW] (streamed)
    # o_ref:      [1, C, 3]          [cm_i, cm_j, softmax_C(mass)]
    # acc_*:      [C, 1] f32         running partial sums (per batch element)
    k = pl.program_id(1)

    @pl.when(k == 0)
    def _():
        acc_i[...] = jnp.zeros_like(acc_i)
        acc_j[...] = jnp.zeros_like(acc_j)
        acc_m[...] = jnp.zeros_like(acc_m)

    x = x_ref[0].astype(jnp.float32)                     # [C, THW]
    ct = coords_ref[k] if coords_resident else coords_ref[0]   # [2, THW]
    ci = ct[0:1, :]                                      # [1, THW] (i / H)
    cj = ct[1:2, :]                                      # [1, THW] (j / W)

    # Three lane-axis reductions: total mass and coordinate-weighted sums.
    acc_m[...] += jnp.sum(x, axis=1, keepdims=True)
    acc_i[...] += jnp.sum(x * ci, axis=1, keepdims=True)
    acc_j[...] += jnp.sum(x * cj, axis=1, keepdims=True)

    @pl.when(k == pl.num_programs(1) - 1)
    def _():
        m = acc_m[...]                                   # [C, 1] total mass
        inv_m = 1.0 / m                                  # nonzero mass assumed
        cm_i = acc_i[...] * inv_m
        cm_j = acc_j[...] * inv_m
        # Softmax of per-channel mass over C (C on sublanes; fine for small C).
        mmax = jnp.max(m, axis=0, keepdims=True)
        e = jnp.exp(m - mmax)
        nm = e / jnp.sum(e, axis=0, keepdims=True)
        # Assemble [C, 3] with VPU selects (no concatenate), one tiny store.
        col = lax.broadcasted_iota(jnp.int32, (m.shape[0], 3), 1)
        out = jnp.where(col == 0, cm_i, jnp.where(col == 1, cm_j, nm))
        o_ref[0] = out.astype(o_ref.dtype)


def _choose_spatial_tile(hw, c, itemsize, target_bytes=2 << 20):
    """Largest multiple of 128 dividing hw with c*t*itemsize <= target.

    2 MiB per x tile (x2 double-buffering) leaves room for the resident coords
    slab inside v5e's 16 MiB default scoped VMEM and v7x's 64 MiB physical VMEM.
    Falls back to the full extent when hw isn't lane-aligned (block == full dim
    is always legal).
    """
    if hw % 128 != 0:
        return hw
    best = None
    t = 128
    while t <= hw:
        if hw % t == 0 and c * t * itemsize <= target_bytes:
            best = t
        t += 128
    return best if best is not None else 128


def mass_block(x, coords, *, spatial_tile=None):
    """x: [B, C, H, W]; coords: [2, H, W] -> [B, C, 3] = [cm_i, cm_j, softmax_C(mass)]."""
    B, C, H, W = x.shape
    assert coords.shape == (2, H, W)
    HW = H * W

    x_flat = x.reshape(B, C, HW)
    coords_flat = coords.reshape(2, HW).astype(jnp.float32)

    if spatial_tile is None:
        spatial_tile = _choose_spatial_tile(HW, C, jnp.dtype(x.dtype).itemsize)
    assert HW % spatial_tile == 0
    num_k = HW // spatial_tile

    # [num_k, 2, THW]: spatial-tile-major so the kernel grabs the k-th slab with
    # a cheap leading-dim dynamic index (lane-dense minor dim, no 128-padding).
    coords_r = coords_flat.reshape(2, num_k, spatial_tile).transpose(1, 0, 2)

    itemsize = jnp.dtype(x.dtype).itemsize
    x_tile_bytes = C * spatial_tile * itemsize
    # VMEM pads the size-2 sublane dim of each (2, THW) slab to 8.
    coords_tile_vmem = 8 * spatial_tile * 4
    coords_res_vmem = num_k * coords_tile_vmem

    # Resident coords (single DMA for the whole grid) unless H*W is huge.
    coords_resident = 2 * coords_res_vmem <= (24 << 20)
    if coords_resident:
        coords_spec = pl.BlockSpec((num_k, 2, spatial_tile), lambda b, k: (0, 0, 0))
        coords_vmem = coords_res_vmem
    else:
        # TODO(synk): for huge H*W with tiny C, a k-outer grid would avoid
        # re-streaming these per-k coords blocks once per batch element.
        coords_spec = pl.BlockSpec((1, 2, spatial_tile), lambda b, k: (k, 0, 0))
        coords_vmem = coords_tile_vmem

    params = {"dimension_semantics": ("parallel", "arbitrary")}
    vmem_need = 2 * x_tile_bytes + 2 * coords_vmem + (2 << 20)
    if vmem_need > (16 << 20):
        params["vmem_limit_bytes"] = int(vmem_need)

    kernel = functools.partial(mass_kernel, coords_resident=coords_resident)

    # NOTE: channel softmax needs the full C dimension in one block; C is never
    # tiled across the grid here.
    return pl.pallas_call(
        kernel,
        out_shape=jax.ShapeDtypeStruct((B, C, 3), jnp.float32),
        grid_spec=pltpu.PrefetchScalarGridSpec(
            num_scalar_prefetch=0,
            grid=(B, num_k),
            in_specs=[
                pl.BlockSpec((1, C, spatial_tile), lambda b, k: (b, 0, k)),
                coords_spec,
            ],
            out_specs=pl.BlockSpec((1, C, 3), lambda b, k: (b, 0, 0)),
            scratch_shapes=[
                pltpu.VMEM((C, 1), jnp.float32),
                pltpu.VMEM((C, 1), jnp.float32),
                pltpu.VMEM((C, 1), jnp.float32),
            ],
        ),
        compiler_params=pltpu.CompilerParams(**params),
    )(x_flat, coords_r)


def make_coords(h, w):
    """coords[0][i, j] = i / h, coords[1][i, j] = j / w  -> [2, h, w].

    Mirrors the PyTorch module: arange(0, 1, 1/dim) per spatial axis,
    meshgrid(indexing='ij'), stacked on a leading axis of size 2.
    """
    ie = jnp.arange(h, dtype=jnp.float32) / h
    je = jnp.arange(w, dtype=jnp.float32) / w
    iv = jnp.broadcast_to(ie[:, None], (h, w))
    jv = jnp.broadcast_to(je[None, :], (h, w))
    return jnp.stack([iv, jv])                                   # [2, h, w]


def mass_block_ref(x, coords):
    # Pure-JAX reference of the intended semantics (high-precision einsum).
    mx = x.sum((2, 3))                                           # [B, C]
    cm = jnp.einsum('bcij,dij->bdc', x, coords,
                    precision='highest') / mx[:, None, :]
    cm = jnp.transpose(cm, (0, 2, 1))                            # [B, C, 2]
    nm = jax.nn.softmax(mx, axis=1)[..., None]                   # [B, C, 1]
    return jnp.concatenate([cm, nm], axis=2)                     # [B, C, 3]


if __name__ == "__main__":
    key = jax.random.PRNGKey(0)

    # Case 1: small NCHW input, square spatial (single spatial tile).
    B, C, H, W = 2, 4, 16, 16
    x = jax.random.uniform(key, (B, C, H, W), dtype=jnp.float32) + 0.1
    coords = make_coords(H, W)
    out = jax.block_until_ready(mass_block(x, coords))
    ref = mass_block_ref(x, coords)
    assert out.shape == (B, C, 3)
    assert jnp.allclose(out, ref, atol=1e-4, rtol=1e-4), \
        f"max err {jnp.max(jnp.abs(out - ref))}"

    # Case 2: non-square spatial with a multi-step spatial reduction
    # (exercises accumulator init/finalize and the resident-coords k-indexing).
    B2, C2, H2, W2 = 2, 3, 8, 32
    x2 = jax.random.uniform(jax.random.PRNGKey(1), (B2, C2, H2, W2),
                            dtype=jnp.float32) + 0.1
    coords2 = make_coords(H2, W2)
    out2 = jax.block_until_ready(mass_block(x2, coords2, spatial_tile=128))
    ref2 = mass_block_ref(x2, coords2)
    assert out2.shape == (B2, C2, 3)
    assert jnp.allclose(out2, ref2, atol=1e-4, rtol=1e-4), \
        f"max err {jnp.max(jnp.abs(out2 - ref2))}"

    print("KERNEL_OK")
</pallas_src>

<mosaic_0001>
module attributes {stable_mosaic.version = 11 : i64} {
  func.func @mass_kernel(%arg0: i32, %arg1: i32, %arg2: memref<1x4x256xf32, #tpu.memory_space<vmem>>, %arg3: memref<1x2x256xf32, #tpu.memory_space<vmem>>, %arg4: memref<1x4x3xf32, #tpu.memory_space<vmem>>, %arg5: memref<4x1xf32, #tpu.memory_space<vmem>>, %arg6: memref<4x1xf32, #tpu.memory_space<vmem>>, %arg7: memref<4x1xf32, #tpu.memory_space<vmem>>) attributes {dimension_semantics = [#tpu.dimension_semantics<parallel>, #tpu.dimension_semantics<arbitrary>], iteration_bounds = array<i64: 2, 1>, scalar_prefetch = 0 : i64, scratch_operands = 3 : i64, tpu.core_type = #tpu.core_type<tc>, window_params = [{transform_indices = @transform_0, window_bounds = array<i64: 1, 4, 256>}, {pipeline_mode = #tpu.pipeline_mode<synchronous>, transform_indices = @transform_1, window_bounds = array<i64: 1, 2, 256>}, {transform_indices = @transform_2, window_bounds = array<i64: 1, 4, 3>}]} {
    %c0_i32 = arith.constant 0 : i32
    %0 = arith.cmpi eq, %arg1, %c0_i32 : i32
    %1 = arith.extui %0 : i1 to i32
    %c0_i32_0 = arith.constant 0 : i32
    %2 = arith.cmpi ne, %1, %c0_i32_0 : i32
    scf.if %2 {
      %cst_21 = arith.constant 0.000000e+00 : f32
      %32 = vector.broadcast %cst_21 : f32 to vector<4x1xf32>
      %c0_22 = arith.constant 0 : index
      %c0_23 = arith.constant 0 : index
      %33 = vector.load %arg5[%c0_22, %c0_23] : memref<4x1xf32, #tpu.memory_space<vmem>>, vector<4x1xf32>
      tpu.vector_store %arg5[%c0_22, %c0_23], %32 {strides = array<i32>} : memref<4x1xf32, #tpu.memory_space<vmem>>, vector<4x1xf32>,
      %cst_24 = arith.constant 0.000000e+00 : f32
      %34 = vector.broadcast %cst_24 : f32 to vector<4x1xf32>
      %c0_25 = arith.constant 0 : index
      %c0_26 = arith.constant 0 : index
      %35 = vector.load %arg6[%c0_25, %c0_26] : memref<4x1xf32, #tpu.memory_space<vmem>>, vector<4x1xf32>
      tpu.vector_store %arg6[%c0_25, %c0_26], %34 {strides = array<i32>} : memref<4x1xf32, #tpu.memory_space<vmem>>, vector<4x1xf32>,
      %cst_27 = arith.constant 0.000000e+00 : f32
      %36 = vector.broadcast %cst_27 : f32 to vector<4x1xf32>
      %c0_28 = arith.constant 0 : index
      %c0_29 = arith.constant 0 : index
      %37 = vector.load %arg7[%c0_28, %c0_29] : memref<4x1xf32, #tpu.memory_space<vmem>>, vector<4x1xf32>
      tpu.vector_store %arg7[%c0_28, %c0_29], %36 {strides = array<i32>} : memref<4x1xf32, #tpu.memory_space<vmem>>, vector<4x1xf32>,
    } else {
    }
    %c0 = arith.constant 0 : index
    %c0_1 = arith.constant 0 : index
    %c0_2 = arith.constant 0 : index
    %3 = vector.load %arg2[%c0, %c0_1, %c0_2] : memref<1x4x256xf32, #tpu.memory_space<vmem>>, vector<1x4x256xf32>
    %4 = vector.shape_cast %3 : vector<1x4x256xf32> to vector<4x256xf32>
    %5 = arith.index_cast %arg1 : i32 to index
    %c0_3 = arith.constant 0 : index
    %c0_4 = arith.constant 0 : index
    %6 = vector.load %arg3[%5, %c0_3, %c0_4] : memref<1x2x256xf32, #tpu.memory_space<vmem>>, vector<1x2x256xf32>
    %7 = vector.shape_cast %6 : vector<1x2x256xf32> to vector<2x256xf32>
    %8 = vector.extract_strided_slice %7 {offsets = [0, 0], sizes = [1, 256], strides = [1, 1]} : vector<2x256xf32> to vector<1x256xf32>
    %9 = vector.extract_strided_slice %7 {offsets = [1, 0], sizes = [1, 256], strides = [1, 1]} : vector<2x256xf32> to vector<1x256xf32>
    %c0_5 = arith.constant 0 : index
    %c0_6 = arith.constant 0 : index
    %10 = vector.load %arg7[%c0_5, %c0_6] : memref<4x1xf32, #tpu.memory_space<vmem>>, vector<4x1xf32>
    %cst = arith.constant dense<0.000000e+00> : vector<4xf32>
    %11 = vector.multi_reduction <add>, %4, %cst [1] : vector<4x256xf32> to vector<4xf32>
    %12 = vector.shape_cast %11 : vector<4xf32> to vector<4x1xf32>
    %13 = arith.addf %10, %12 : vector<4x1xf32>
    %c0_7 = arith.constant 0 : index
    %c0_8 = arith.constant 0 : index
    %14 = vector.load %arg7[%c0_7, %c0_8] : memref<4x1xf32, #tpu.memory_space<vmem>>, vector<4x1xf32>
    tpu.vector_store %arg7[%c0_7, %c0_8], %13 {strides = array<i32>} : memref<4x1xf32, #tpu.memory_space<vmem>>, vector<4x1xf32>,
    %c0_9 = arith.constant 0 : index
    %c0_10 = arith.constant 0 : index
    %15 = vector.load %arg5[%c0_9, %c0_10] : memref<4x1xf32, #tpu.memory_space<vmem>>, vector<4x1xf32>
    %16 = vector.broadcast %8 : vector<1x256xf32> to vector<4x256xf32>
    %17 = arith.mulf %4, %16 : vector<4x256xf32>
    %cst_11 = arith.constant dense<0.000000e+00> : vector<4xf32>
    %18 = vector.multi_reduction <add>, %17, %cst_11 [1] : vector<4x256xf32> to vector<4xf32>
    %19 = vector.shape_cast %18 : vector<4xf32> to vector<4x1xf32>
    %20 = arith.addf %15, %19 : vector<4x1xf32>
    %c0_12 = arith.constant 0 : index
    %c0_13 = arith.constant 0 : index
    %21 = vector.load %arg5[%c0_12, %c0_13] : memref<4x1xf32, #tpu.memory_space<vmem>>, vector<4x1xf32>
    tpu.vector_store %arg5[%c0_12, %c0_13], %20 {strides = array<i32>} : memref<4x1xf32, #tpu.memory_space<vmem>>, vector<4x1xf32>,
    %c0_14 = arith.constant 0 : index
    %c0_15 = arith.constant 0 : index
    %22 = vector.load %arg6[%c0_14, %c0_15] : memref<4x1xf32, #tpu.memory_space<vmem>>, vector<4x1xf32>
    %23 = vector.broadcast %9 : vector<1x256xf32> to vector<4x256xf32>
    %24 = arith.mulf %4, %23 : vector<4x256xf32>
    %cst_16 = arith.constant dense<0.000000e+00> : vector<4xf32>
    %25 = vector.multi_reduction <add>, %24, %cst_16 [1] : vector<4x256xf32> to vector<4xf32>
    %26 = vector.shape_cast %25 : vector<4xf32> to vector<4x1xf32>
    %27 = arith.addf %22, %26 : vector<4x1xf32>
    %c0_17 = arith.constant 0 : index
    %c0_18 = arith.constant 0 : index
    %28 = vector.load %arg6[%c0_17, %c0_18] : memref<4x1xf32, #tpu.memory_space<vmem>>, vector<4x1xf32>
    tpu.vector_store %arg6[%c0_17, %c0_18], %27 {strides = array<i32>} : memref<4x1xf32, #tpu.memory_space<vmem>>, vector<4x1xf32>,
    %c0_i32_19 = arith.constant 0 : i32
    %29 = arith.cmpi eq, %arg1, %c0_i32_19 : i32
    %30 = arith.extui %29 : i1 to i32
    %c0_i32_20 = arith.constant 0 : i32
    %31 = arith.cmpi ne, %30, %c0_i32_20 : i32
    scf.if %31 {
      %c0_21 = arith.constant 0 : index
      %c0_22 = arith.constant 0 : index
      %32 = vector.load %arg7[%c0_21, %c0_22] : memref<4x1xf32, #tpu.memory_space<vmem>>, vector<4x1xf32>
      %cst_23 = arith.constant 1.000000e+00 : f32
      %33 = vector.broadcast %cst_23 : f32 to vector<4x1xf32>
      %34 = arith.divf %33, %32 : vector<4x1xf32>
      %c0_24 = arith.constant 0 : index
      %c0_25 = arith.constant 0 : index
      %35 = vector.load %arg5[%c0_24, %c0_25] : memref<4x1xf32, #tpu.memory_space<vmem>>, vector<4x1xf32>
      %36 = arith.mulf %35, %34 : vector<4x1xf32>
      %c0_26 = arith.constant 0 : index
      %c0_27 = arith.constant 0 : index
      %37 = vector.load %arg6[%c0_26, %c0_27] : memref<4x1xf32, #tpu.memory_space<vmem>>, vector<4x1xf32>
      %38 = arith.mulf %37, %34 : vector<4x1xf32>
      %cst_28 = arith.constant dense<0xFF800000> : vector<1xf32>
      %39 = vector.multi_reduction <maximumf>, %32, %cst_28 [0] : vector<4x1xf32> to vector<1xf32>
      %40 = vector.shape_cast %39 : vector<1xf32> to vector<1x1xf32>
      %41 = vector.broadcast %40 : vector<1x1xf32> to vector<4x1xf32>
      %42 = arith.subf %32, %41 : vector<4x1xf32>
      %43 = math.exp %42 : vector<4x1xf32>
      %cst_29 = arith.constant dense<0.000000e+00> : vector<1xf32>
      %44 = vector.multi_reduction <add>, %43, %cst_29 [0] : vector<4x1xf32> to vector<1xf32>
      %45 = vector.shape_cast %44 : vector<1xf32> to vector<1x1xf32>
      %46 = vector.broadcast %45 : vector<1x1xf32> to vector<4x1xf32>
      %47 = arith.divf %43, %46 : vector<4x1xf32>
      %48 = tpu.iota {dimensions = array<i32: 1>} : vector<4x3xi32>
      %c0_i32_30 = arith.constant 0 : i32
      %49 = vector.broadcast %c0_i32_30 : i32 to vector<4x3xi32>
      %50 = arith.cmpi eq, %48, %49 : vector<4x3xi32>
      %c1_i32 = arith.constant 1 : i32
      %51 = vector.broadcast %c1_i32 : i32 to vector<4x3xi32>
      %52 = arith.cmpi eq, %48, %51 : vector<4x3xi32>
      %53 = vector.shape_cast %38 : vector<4x1xf32> to vector<4x1xf32>
      %54 = vector.broadcast %53 : vector<4x1xf32> to vector<4x3xf32>
      %55 = vector.shape_cast %47 : vector<4x1xf32> to vector<4x1xf32>
      %56 = vector.broadcast %55 : vector<4x1xf32> to vector<4x3xf32>
      %57 = arith.select %52, %54, %56 : vector<4x3xi1>, vector<4x3xf32>
      %58 = vector.shape_cast %36 : vector<4x1xf32> to vector<4x1xf32>
      %59 = vector.broadcast %58 : vector<4x1xf32> to vector<4x3xf32>
      %60 = arith.select %50, %59, %57 : vector<4x3xi1>, vector<4x3xf32>
      %c0_31 = arith.constant 0 : index
      %c0_32 = arith.constant 0 : index
      %c0_33 = arith.constant 0 : index
      %61 = vector.load %arg4[%c0_31, %c0_32, %c0_33] : memref<1x4x3xf32, #tpu.memory_space<vmem>>, vector<1x4x3xf32>
      %62 = vector.shape_cast %61 : vector<1x4x3xf32> to vector<4x3xf32>
      %63 = vector.shape_cast %60 : vector<4x3xf32> to vector<1x4x3xf32>
      tpu.vector_store %arg4[%c0_31, %c0_32, %c0_33], %63 {strides = array<i32>} : memref<1x4x3xf32, #tpu.memory_space<vmem>>, vector<1x4x3xf32>,
    } else {
    }
    return
  }
  func.func @transform_0(%arg0: i32, %arg1: i32) -> (i32, i32, i32) {
    %c0_i32 = arith.constant 0 : i32
    %c0_i32_0 = arith.constant 0 : i32
    return %arg0, %c0_i32, %arg1 : i32, i32, i32
  }
  func.func @transform_1(%arg0: i32, %arg1: i32) -> (i32, i32, i32) {
    %c0_i32 = arith.constant 0 : i32
    %c0_i32_0 = arith.constant 0 : i32
    %c0_i32_1 = arith.constant 0 : i32
    %c0_i32_2 = arith.constant 0 : i32
    return %c0_i32, %c0_i32_0, %c0_i32_1 : i32, i32, i32
  }
  func.func @transform_2(%arg0: i32, %arg1: i32) -> (i32, i32, i32) {
    %c0_i32 = arith.constant 0 : i32
    %c0_i32_0 = arith.constant 0 : i32
    %c0_i32_1 = arith.constant 0 : i32
    return %arg0, %c0_i32, %c0_i32_0 : i32, i32, i32
  }
}

</mosaic_0001>

<llo_original>
// kernel: tpu_custom_call.1
$region0: #{tpu_custom_call.1}
  #allocation0 [shape = 'u32[]', space=smem, size = 0x4, offset = 0x4, fixed_abs, tag = 'smem constant byte address 0x4 - core index']
  #allocation1 [shape = 'u32[144,128]{1,0:T(1,128)}', space=vmem, size = 0x12000, scoped, tag = 'internal scratch']
  #allocation2 [shape = 'f32[4,1]{1,0:T(4,128)}', space=vmem, size = 0x800, scoped, tag = 'scratch operand']
  #allocation3 [shape = 'f32[4,1]{1,0:T(4,128)}', space=vmem, size = 0x800, scoped, tag = 'scratch operand']
  #allocation4 [shape = 'f32[4,1]{1,0:T(4,128)}', space=vmem, size = 0x800, scoped, tag = 'scratch operand']
  %s0 = inlined_call_operand.hbm [shape: f32[2,4,256], index: 0, kind: input, shape index: {}]
  %s1 = inlined_call_operand.hbm [shape: f32[1,2,256], index: 1, kind: input, shape index: {}]
  %s2 = inlined_call_operand.vmem [shape: f32[2,4,3], index: 2, kind: output, shape index: {}]
  %s3 = sld [smem:[#allocation0]]
  $region57: #{tpu_custom_call.1} parent=0
    _
  %s5 = ssub.s32 1, %s3
  %s6 = scalar_select 0, %s5, %s3
  $region1: #{tpu_custom_call.1} parent=0
    #allocation5 [shape = 'u8[8192]{0}', space=vmem, size = 0x2000, scoped, tag = 'input window, operand 0']
    #allocation6 [shape = 's32[2]{0}', space=sflag, size = 0x8, scoped, tag = 'scoped memory for tpu_custom_call.1']
    #allocation7 [shape = 'u8[2048]{0}', space=vmem, size = 0x800, scoped, tag = 'input window, operand 1, single buffered']
    #allocation8 [shape = 's32[1]{0}', space=sflag, size = 0x4, scoped, tag = 'scoped memory for tpu_custom_call.1']
    %7 = vsyncpa [#allocation6], 0
    %s8 = scalar_lea.sflag [#allocation6], 1
    %9 = vsyncpa %s8, 0
    %10 = vsyncpa [#allocation8], 0
    loop: start=0, step=1, limit=4
    $region2: #{tpu_custom_call.1} parent=1 // loop_pre_header
      _
    $region3: #{tpu_custom_call.1} parent=1 // loop_header
      %s12 = sphi 0, %s16
      %p13 = scmp.ge.s32.totalorder %s12, 4
      %s19 = sphi 0, %s31
      %s20 = sphi 0, %s27
      %s21 = sphi 0, %s19
      %s22 = sphi 0, %s20
      %s23 = sphi 0, %s21
      %s24 = sphi 0, %s22
      %s36 = sphi 0, %s38
      %s39 = sphi 0, %s36
      %s40 = sphi 0, %s39
      %s56 = sphi 0, %s40
      %s60 = sphi 0, %s60
      %s62 = sphi 0, %s60
      %s63 = sphi 0, %s62
      %s77 = sphi 0, %s63
      %s83 = sphi 0, %s85
      %s86 = sphi 0, %s83
      %s87 = sphi 0, %s86
      %s103 = sphi 0, %s87
    $region4: #{tpu_custom_call.1} parent=1 // loop_header_branch
      %15 = sbr.rel (%p13) target = $region8
    $region5: #{tpu_custom_call.1} parent=1 // loop_body
      %s17 = ssub.s32 %s12, 1
      %s18 = ssub.s32 %s12, 2
      %s25 = sadd.s32 1, %s20
      %p26 = scmp.ge.s32.totalorder %s25, 1
      %s27 = scalar_select %p26, 0, %s25
      %s28 = sadd.s32 1, %s19
      %s29 = scalar_select %p26, %s28, %s19
      %p30 = scmp.ge.s32.totalorder %s29, 2
      %s31 = scalar_select %p30, 0, %s29
      %s32 = ssub.s32 %s19, %s31
      %s33 = ssub.s32 %s20, %s27
      %s34 = sor.u32 %s32, %s33
      %p35 = scmp.eq.s32.totalorder %s34, 0
      %s37 = sadd.s32 %s36, 1
      %s38 = scalar_select %p35, %s36, %s37
      %p41 = pneg %p35
      %p42 = scmp.eq.s32.totalorder %s12, 1
      %p43 = por %p41, %p42
      %p44 = scmp.ne.s32.totalorder %s36, %s39
      %p45 = scmp.eq.s32.totalorder %s12, 0
      %p46 = por %p44, %p45
      %p47 = scmp.ne.s32.totalorder %s36, %s39
      %p48 = scmp.eq.s32.totalorder %s17, 1
      %p49 = por %p47, %p48
      %p50 = scmp.ne.s32.totalorder %s39, %s40
      %p51 = scmp.eq.s32.totalorder %s17, 0
      %p52 = por %p50, %p51
      %p53 = scmp.ne.s32.totalorder %s39, %s40
      %p54 = scmp.eq.s32.totalorder %s18, 1
      %p55 = por %p53, %p54
      %p57 = scmp.ne.s32.totalorder %s40, %s56
      %p58 = scmp.eq.s32.totalorder %s18, 0
      %p59 = por %p57, %p58
      %s61 = sadd.s32 %s60, 1
      %p64 = scmp.eq.s32.totalorder %s12, 1
      %p65 = scmp.ne.s32.totalorder %s60, %s62
      %p66 = scmp.eq.s32.totalorder %s12, 0
      %p67 = por %p65, %p66
      %p68 = scmp.ne.s32.totalorder %s60, %s62
      %p69 = scmp.eq.s32.totalorder %s17, 1
      %p70 = por %p68, %p69
      %p71 = scmp.ne.s32.totalorder %s62, %s63
      %p72 = scmp.eq.s32.totalorder %s17, 0
      %p73 = por %p71, %p72
      %p74 = scmp.ne.s32.totalorder %s62, %s63
      %p75 = scmp.eq.s32.totalorder %s18, 1
      %p76 = por %p74, %p75
      %p78 = scmp.ne.s32.totalorder %s63, %s77
      %p79 = scmp.eq.s32.totalorder %s18, 0
      %p80 = por %p78, %p79
      %s81 = ssub.s32 %s19, %s31
      %p82 = scmp.eq.s32.totalorder %s81, 0
      %s84 = sadd.s32 %s83, 1
      %s85 = scalar_select %p82, %s83, %s84
      %p88 = pneg %p82
      %p89 = scmp.eq.s32.totalorder %s12, 1
      %p90 = por %p88, %p89
      %p91 = scmp.ne.s32.totalorder %s83, %s86
      %p92 = scmp.eq.s32.totalorder %s12, 0
      %p93 = por %p91, %p92
      %p94 = scmp.ne.s32.totalorder %s83, %s86
      %p95 = scmp.eq.s32.totalorder %s17, 1
      %p96 = por %p94, %p95
      %p97 = scmp.ne.s32.totalorder %s86, %s87
      %p98 = scmp.eq.s32.totalorder %s17, 0
      %p99 = por %p97, %p98
      %p100 = scmp.ne.s32.totalorder %s86, %s87
      %p101 = scmp.eq.s32.totalorder %s18, 1
      %p102 = por %p100, %p101
      %p104 = scmp.ne.s32.totalorder %s87, %s103
      %p105 = scmp.eq.s32.totalorder %s18, 0
      %p106 = por %p104, %p105
      %p107 = scmp.le.s32.totalorder 1, %s12
      %p108 = scmp.lt.s32.totalorder %s12, 3
      %p109 = pnand %p107, %p108
      %p110 = pneg %p109
      // Predicated region
      $region9: #{tpu_custom_call.1} parent=5 // pred_check
        _
      $region10: #{tpu_custom_call.1} parent=5 // pred_check_branch
        %112 = sbr.rel (%p109) target = $region12
      $region11: #{tpu_custom_call.1} parent=5 // pred_region
        %s113 = ssub.s32 %s12, 1
        // Predicated region
        $region13: #{tpu_custom_call.1} parent=11 // pred_check
          %p114 = pneg %p73
        $region14: #{tpu_custom_call.1} parent=11 // pred_check_branch
          %116 = sbr.rel (%p114) target = $region16
        $region15: #{tpu_custom_call.1} parent=11 // pred_region
          %s118 = ssub.s32 64, 64
          %119 = vsyncadd [#allocation8], %s118
          %s121 = sshll.u32 [#allocation7], 4
          %s122 = int_to_ptr.vmem [resolvable:$true] %s121
          %124 = dma.hbm_to_vmem [thread:$0]  %s1, 64, %s122, [#allocation8]
        $region16: #{tpu_custom_call.1} parent=11 // pred_fallthru
          _
      $region12: #{tpu_custom_call.1} parent=5 // pred_fallthru
        _
      %p125 = scmp.lt.s32.totalorder %s12, 2
      // Predicated region
      $region17: #{tpu_custom_call.1} parent=5 // pred_check
        %p126 = pneg %p125
      $region18: #{tpu_custom_call.1} parent=5 // pred_check_branch
        %128 = sbr.rel (%p126) target = $region20
      $region19: #{tpu_custom_call.1} parent=5 // pred_region
        // Predicated region
        $region21: #{tpu_custom_call.1} parent=19 // pred_check
          %p129 = pneg %p46
        $region22: #{tpu_custom_call.1} parent=19 // pred_check_branch
          %131 = sbr.rel (%p129) target = $region24
        $region23: #{tpu_custom_call.1} parent=19 // pred_region
          %s132 = sand.u32 %s36, 1
          %s133 = scalar_lea.sflag [#allocation6], %s132
          %s134 = sand.u32 %s36, 1
          %s135 = smul.addr %s134, 8
          %s136 = scalar_lea.vmem [#allocation5], %s135
          %s137 = smul.u32 2, %s20
          %s139 = ssub.s32 128, 128
          %140 = vsyncadd %s133, %s139
          %s141 = smul.addr %s19, 2
          %s142 = sadd.s32 %s137, %s141
          %s143 = smul.addr %s142, 64
          %s144 = scalar_lea.hbm %s0, %s143
          %s146 = sshll.u32 %s136, 4
          %s147 = int_to_ptr.vmem [resolvable:$true] %s146
          %149 = dma.hbm_to_vmem [thread:$0]  %s144, 128, %s147, %s133
        $region24: #{tpu_custom_call.1} parent=19 // pred_fallthru
          _
      $region20: #{tpu_custom_call.1} parent=5 // pred_fallthru
        _
      %p150 = scmp.le.s32.totalorder 1, %s12
      %p151 = scmp.lt.s32.totalorder %s12, 3
      %p152 = pnand %p150, %p151
      %p153 = pneg %p152
      // Predicated region
      $region25: #{tpu_custom_call.1} parent=5 // pred_check
        _
      $region26: #{tpu_custom_call.1} parent=5 // pred_check_branch
        %155 = sbr.rel (%p152) target = $region28
      $region27: #{tpu_custom_call.1} parent=5 // pred_region
        %s156 = ssub.s32 %s12, 1
        %s157 = sand.u32 %s39, 1
        %s158 = scalar_lea.sflag [#allocation6], %s157
        %s159 = sand.u32 %s39, 1
        %s160 = smul.addr %s159, 8
        %s161 = scalar_lea.vmem [#allocation5], %s160
        // Predicated region
        $region29: #{tpu_custom_call.1} parent=27 // pred_check
          %p162 = pneg %p52
        $region30: #{tpu_custom_call.1} parent=27 // pred_check_branch
          %164 = sbr.rel (%p162) target = $region32
        $region31: #{tpu_custom_call.1} parent=27 // pred_region
          %165 = dma.done %s158, 128
        $region32: #{tpu_custom_call.1} parent=27 // pred_fallthru
          _
        // Predicated region
        $region33: #{tpu_custom_call.1} parent=27 // pred_check
          %p166 = pneg %p73
        $region34: #{tpu_custom_call.1} parent=27 // pred_check_branch
          %168 = sbr.rel (%p166) target = $region36
        $region35: #{tpu_custom_call.1} parent=27 // pred_region
          %169 = dma.done [#allocation8], 64
        $region36: #{tpu_custom_call.1} parent=27 // pred_fallthru
          _
        %s170 = sand.u32 %s39, 1
        %s171 = scalar_lea.sflag [#allocation6], %s170
        %s172 = sand.u32 %s39, 1
        %s173 = smul.addr %s172, 8
        %s174 = scalar_lea.vmem [#allocation5], %s173
        %p175 = pneg %p52
        %p176 = pneg %p49
        %p177 = pneg %p73
        %p178 = pneg %p70
        %p179 = pneg %p99
        %p180 = pneg %p96
        %p181 = scmp.lt.s32.totalorder %s21, 1
        %s182 = scalar_select %p181, %s21, 1
        %s183 = smul.addr %s182, 4
        %s184 = scalar_lea.vmem %s2, %s183
        %s185 = smul.u32 2, %s22
        %p186 = scmp.lt.s32.totalorder %s21, 1
        %s187 = scalar_select %p186, %s21, 1
        %s188 = smul.addr %s187, 4
        %s189 = scalar_lea.vmem %s2, %s188
        %p190 = scmp.eq.s32.totalorder %s22, 0
        // Predicated region
        $region37: #{tpu_custom_call.1} parent=27 // pred_check
          %p191 = pneg %p190
        $region38: #{tpu_custom_call.1} parent=27 // pred_check_branch
          %193 = sbr.rel (%p191) target = $region40
        $region39: #{tpu_custom_call.1} parent=27 // pred_region
          %vm194 = vcmask 3072
          %195 = vst.msk [vmem:[#allocation2] sm:$0xf] %vm194, 0.0
          %196 = vst.msk [vmem:[#allocation3] sm:$0xf] %vm194, 0.0
          %197 = vst.msk [vmem:[#allocation4] sm:$0xf] %vm194, 0.0
        $region40: #{tpu_custom_call.1} parent=27 // pred_fallthru
          _
        %v198 = vld [vmem:[%s161] sm:$0xff]
        %s199 = smul.u32 %s22, 2
        %s200 = smul.addr %s199, 2
        %s201 = scalar_lea.vmem [#allocation7], %s200
        %v202 = vld [vmem:[%s201] sm:$0xf]
        %v203 = vld [vmem:[#allocation4] sm:$0xf]
        %v205 = vcombine.high %v198, %v198
        %vm207 = vcmask 1043456
        %v208 = vsel %vm207, %v198, 0.0
        %v209 = vsel %vm207, %v205, 0.0
        %v210 = vadd.f32 %v208, %v209
        %211 = vadd.xlane.f32.xlu0 %v210
        %v212 = vpop.xlane.xlu0 %211
        %v213 = vadd.f32 %v203, %v212
        %vm214 = vcmask 3072
        %215 = vst.msk [vmem:[#allocation4] sm:$0xf] %vm214, %v213
        %v216 = vld [vmem:[#allocation2] sm:$0xf]
        %v218 = vlaneseq
        %v219 = vshrl.u32 %v218, 7
        %v220 = vsub.s32 0, %v219
        %v221 = vrot.slane %v202, %v220
        %v222 = vlaneseq
        %v223 = vshrl.u32 %v222, 7
        %v224 = vsub.s32 2, %v223
        %v225 = vrot.slane %v202, %v224
        %v228 = vlaneseq
        %v229 = vshrl.u32 %v228, 7
        %v230 = vsub.s32 0, %v229
        %v231 = vrot.slane %v221, %v230
        %v232 = vlaneseq
        %v233 = vshrl.u32 %v232, 7
        %v234 = vsub.s32 0, %v233
        %v235 = vrot.slane %v225, %v234
        %v238 = vcombine.low %v231, %v235
        %v240 = vmul.f32 %v198, %v238
        %v242 = vcombine.high %v240, %v240
        %v244 = vsel %vm207, %v240, 0.0
        %v245 = vsel %vm207, %v242, 0.0
        %v246 = vadd.f32 %v244, %v245
        %247 = vadd.xlane.f32.xlu0 %v246
        %v248 = vpop.xlane.xlu0 %247
        %v249 = vadd.f32 %v216, %v248
        %250 = vst.msk [vmem:[#allocation2] sm:$0xf] %vm214, %v249
        %v251 = vld [vmem:[#allocation3] sm:$0xf]
        %v252 = vlaneseq
        %v253 = vshrl.u32 %v252, 7
        %v254 = vsub.s32 1, %v253
        %v255 = vrot.slane %v202, %v254
        %v256 = vlaneseq
        %v257 = vshrl.u32 %v256, 7
        %v258 = vsub.s32 3, %v257
        %v259 = vrot.slane %v202, %v258
        %v262 = vlaneseq
        %v263 = vshrl.u32 %v262, 7
        %v264 = vsub.s32 1, %v263
        %v265 = vrot.slane %v255, %v264
        %v266 = vlaneseq
        %v267 = vshrl.u32 %v266, 7
        %v268 = vsub.s32 1, %v267
        %v269 = vrot.slane %v259, %v268
        %v272 = vcombine.low %v265, %v269
        %v274 = vmul.f32 %v198, %v272
        %v276 = vcombine.high %v274, %v274
        %v278 = vsel %vm207, %v274, 0.0
        %v279 = vsel %vm207, %v276, 0.0
        %v280 = vadd.f32 %v278, %v279
        %281 = vadd.xlane.f32.xlu0 %v280
        %v282 = vpop.xlane.xlu0 %281
        %v283 = vadd.f32 %v251, %v282
        %284 = vst.msk [vmem:[#allocation3] sm:$0xf] %vm214, %v283
        // Predicated region
        $region41: #{tpu_custom_call.1} parent=27 // pred_check
          %p285 = pneg %p190
        $region42: #{tpu_custom_call.1} parent=27 // pred_check_branch
          %287 = sbr.rel (%p285) target = $region44
        $region43: #{tpu_custom_call.1} parent=27 // pred_region
          %v288 = vld [vmem:[#allocation4] sm:$0xf]
          %v289 = vrcp.pop %v288
          %v290 = vmul.f32 1.0, %v289
          %v291 = vld [vmem:[#allocation2] sm:$0xf]
          %v292 = vmul.f32 %v291, %v290
          %v293 = vld [vmem:[#allocation3] sm:$0xf]
          %v294 = vmul.f32 %v293, %v290
          %v295 = vsel %vm214, %v288, -inf
          %v296 = vrot.slane %v295, 4
          %v297 = vmax.f32 %v295, %v296
          %v298 = vrot.slane %v297, 2
          %v299 = vmax.f32 %v297, %v298
          %v300 = vrot.slane %v299, 1
          %v301 = vmax.f32 %v299, %v300
          %v302 = vsub.f32 %v288, %v301
          %v303 = vmul.f32 %v302, 1.442695
          %v304 = vpow.pop %v303
          %v305 = vsel %vm214, %v304, 0.0
          %v306 = vrot.slane %v305, 4
          %v307 = vadd.f32 %v305, %v306
          %v308 = vrot.slane %v307, 2
          %v309 = vadd.f32 %v307, %v308
          %v310 = vrot.slane %v309, 1
          %v311 = vadd.f32 %v309, %v310
          %v312 = vrcp.pop %v311
          %v313 = vmul.f32 %v304, %v312
          %v314 = vlaneseq
          %v315 = vand.u32 %v314, 127
          %vm316 = vcmp.eq.s32.totalorder %v315, 0
          %vm317 = vcmp.eq.s32.totalorder %v315, 1
          %319 = vset.pattern.permute.xlu0 0
          %320 = vperm.xlu0 %319, %v294
          %v321 = vpop.permute.xlu0 %320
          %324 = vset.pattern.permute.xlu0 0
          %325 = vperm.xlu0 %324, %v313
          %v326 = vpop.permute.xlu0 %325
          %v328 = vsel %vm317, %v321, %v326
          %330 = vset.pattern.permute.xlu0 0
          %331 = vperm.xlu0 %330, %v292
          %v332 = vpop.permute.xlu0 %331
          %v334 = vsel %vm316, %v332, %v328
          %vm335 = vcmask 19456
          %336 = vst.msk [vmem:[%s189] sm:$0xf] %vm335, %v334
        $region44: #{tpu_custom_call.1} parent=27 // pred_fallthru
          _
        %p337 = scmp.lt.s32.totalorder %s21, 1
        %s338 = scalar_select %p337, %s21, 1
        %s339 = smul.addr %s338, 4
        %s340 = scalar_lea.vmem %s2, %s339
        // Predicated region
        $region45: #{tpu_custom_call.1} parent=27 // pred_check
          %p341 = pneg %p96
        $region46: #{tpu_custom_call.1} parent=27 // pred_check_branch
          %343 = sbr.rel (%p341) target = $region48
        $region47: #{tpu_custom_call.1} parent=27 // pred_region
          _
        $region48: #{tpu_custom_call.1} parent=27 // pred_fallthru
          _
      $region28: #{tpu_custom_call.1} parent=5 // pred_fallthru
        _
      %p344 = scmp.le.s32.totalorder 2, %s12
      // Predicated region
      $region49: #{tpu_custom_call.1} parent=5 // pred_check
        %p345 = pneg %p344
      $region50: #{tpu_custom_call.1} parent=5 // pred_check_branch
        %347 = sbr.rel (%p345) target = $region52
      $region51: #{tpu_custom_call.1} parent=5 // pred_region
        %s348 = ssub.s32 %s12, 2
        // Predicated region
        $region53: #{tpu_custom_call.1} parent=51 // pred_check
          %p349 = pneg %p102
        $region54: #{tpu_custom_call.1} parent=51 // pred_check_branch
          %351 = sbr.rel (%p349) target = $region56
        $region55: #{tpu_custom_call.1} parent=51 // pred_region
          %p352 = scmp.lt.s32.totalorder %s23, 1
          %s353 = scalar_select %p352, %s23, 1
          %s354 = smul.addr %s353, 4
          %s355 = scalar_lea.vmem %s2, %s354
        $region56: #{tpu_custom_call.1} parent=51 // pred_fallthru
          _
      $region52: #{tpu_custom_call.1} parent=5 // pred_fallthru
        _
    $region6: #{tpu_custom_call.1} parent=1 // loop_footer
      %s16 = sadd.s32 1, %s12
    $region7: #{tpu_custom_call.1} parent=1 // loop_footer_branch
      %11 = sbr.rel target = $region3
    $region8: #{tpu_custom_call.1} parent=1 // loop_exit
      _
    %356 = vsyncpa [#allocation6], 1
    %s357 = scalar_lea.sflag [#allocation6], 1
    %358 = vsyncpa %s357, 1
    %359 = vsyncpa [#allocation8], 1

</llo_original>
